<compile_context>
chip_gen: v6e
topology: v6e:2x2x1
jax: 0.10.0
libtpu: 0.0.40
codegen_flags: <defaults>
</compile_context>

<pallas_src>
import functools

import jax
import jax.numpy as jnp
from jax.experimental import pallas as pl
from jax.experimental.pallas import tpu as pltpu


def _int_pow(x, n):
    """x**n for a small positive integer n using only VALU multiplies."""
    result = None
    base = x
    while n > 0:
        if n & 1:
            result = base if result is None else result * base
        n >>= 1
        if n:
            base = base * base
    return result


def _vfl_kernel(pred_ref, gt_ref, label_ref, out_ref, acc_ref, *,
                alpha, gamma, tiles_per_slice, row_tile, valid_rows,
                total_tiles, binary_label, gate_tiles):
    s = pl.program_id(0)   # slice axis ("parallel"; useful on v7x only)
    t = pl.program_id(1)   # sequential reduction axis

    @pl.when(t == 0)
    def _():
        acc_ref[...] = jnp.zeros_like(acc_ref)

    def accumulate(mask_rows):
        # float32 math mirrors the autocast(enabled=False) block in the reference.
        x = pred_ref[...].astype(jnp.float32)   # logits
        z = gt_ref[...].astype(jnp.float32)     # soft targets

        # Shared transcendental core: e = exp(-|x|).
        #   sigmoid(x)        = 1/(1+e)            (x >= 0)   or  e/(1+e)  (x < 0)
        #   log1p(exp(-|x|))  = log1p(e)           (BCE log term, accurate tails)
        e = jnp.exp(-jnp.abs(x))
        inv = 1.0 / (1.0 + e)
        sig = jnp.where(x >= 0.0, inv, e * inv)
        log_term = jnp.log1p(e)

        g = float(gamma)
        if g == 2.0:
            sig_pow = sig * sig                       # common case: VALU only
        elif g == 1.0:
            sig_pow = sig
        elif g.is_integer() and 2.0 < g <= 8.0:
            sig_pow = _int_pow(sig, int(g))
        else:
            # sigmoid(x)**g = exp(g * log(sigmoid(x))), log(sigmoid(x)) = min(x,0) - log1p(e)
            sig_pow = jnp.exp(g * (jnp.minimum(x, 0.0) - log_term))

        focal = alpha * sig_pow
        if binary_label:
            # 0/1 indicator: select instead of the arithmetic blend — no f32 cast
            # of the label and ~5 fewer VALU ops/elem (matters on v7x).
            weight = jnp.where(label_ref[...] != 0, z, focal)
        else:
            lbl = label_ref[...].astype(jnp.float32)  # soft labels: exact blend
            weight = focal * (1.0 - lbl) + z * lbl

        # BCEWithLogits: max(x,0) - x*z + log1p(exp(-|x|))
        bce = jnp.maximum(x, 0.0) - x * z + log_term
        contrib = bce * weight

        if mask_rows:
            # Only the last (ragged) tile reaches this branch; its row offset is a
            # compile-time constant, so the mask is iota + compare + select only here.
            start = (total_tiles - 1) * row_tile
            row_ids = start + jax.lax.broadcasted_iota(jnp.int32, contrib.shape, 0)
            contrib = jnp.where(row_ids < valid_rows, contrib, 0.0)

        c = contrib.shape[-1]
        if acc_ref.shape[0] == 8:
            # Group-of-8 partial sums: pure VALU adds across vregs; no per-tile
            # cross-sublane (XLU) reduce.
            acc_ref[...] += contrib.reshape(-1, 8, c).sum(axis=0)
        else:
            acc_ref[...] += jnp.sum(contrib, axis=0, keepdims=True)

    if not gate_tiles:
        # Every tile is full and real: no masking anywhere.
        accumulate(mask_rows=False)
    else:
        tile_idx = s * tiles_per_slice + t           # logical tile index
        has_ragged = (valid_rows % row_tile) != 0
        n_full = total_tiles - (1 if has_ragged else 0)

        @pl.when(tile_idx < n_full)
        def _():
            accumulate(mask_rows=False)

        if has_ragged:
            @pl.when(tile_idx == total_tiles - 1)
            def _():
                accumulate(mask_rows=True)
        # tile_idx >= total_tiles ("phantom" tiles from the slice round-up): skipped.

    @pl.when(t == pl.num_programs(1) - 1)
    def _():
        out_ref[...] = jnp.sum(acc_ref[...], axis=0, keepdims=True).reshape(
            1, 1, acc_ref.shape[-1])


def varifocal_loss(pred_score, gt_score, label, alpha=1.25, gamma=2.0, *,
                   row_tile=8192, num_slices=1):
    """Sum-reduced varifocal loss (forward) as a single Pallas TPU kernel.

    pred_score / gt_score may be float32 or bfloat16 (cast to f32 inside the
    kernel; bf16 inputs halve HBM traffic on memory-bound chips).
    num_slices: leave at 1 for v5e/v6e (single TensorCore); pass 2 on v7x.
    """
    C = pred_score.shape[-1]
    pred2 = pred_score.reshape(-1, C)
    gt2 = gt_score.reshape(-1, C)
    lbl2 = label.reshape(-1, C)

    # Label handling: bool -> int8 (1 B stays 1 B, keeps Mosaic happy); other
    # integer dtypes ship as-is (no standalone downcast pass); float (soft)
    # labels pass through unchanged and use the exact arithmetic blend.
    binary_label = not jnp.issubdtype(lbl2.dtype, jnp.floating)
    if lbl2.dtype == jnp.bool_:
        lbl2 = lbl2.astype(jnp.int8)

    M = pred2.shape[0]

    # Tile sizing: biggest row tile that keeps double-buffered inputs <= ~40 MiB
    # (safe inside v7x's 64 MiB VMEM; plenty of headroom on v5e/v6e).
    bytes_per_row = C * (pred2.dtype.itemsize + gt2.dtype.itemsize + lbl2.dtype.itemsize)
    max_rows = max(32, ((40 << 20) // (2 * bytes_per_row)) // 32 * 32)
    row_tile = min(int(row_tile), max_rows)

    if M <= row_tile:
        row_tile = M                      # single block spans the whole row axis
        total_tiles = 1
    else:
        row_tile = max(32, (row_tile // 32) * 32)   # int8/bf16 sublane packing
        total_tiles = pl.cdiv(M, row_tile)

    num_slices = max(1, min(int(num_slices), total_tiles))
    tiles_per_slice = pl.cdiv(total_tiles, num_slices)

    has_ragged = (M % row_tile) != 0
    has_phantom = num_slices * tiles_per_slice != total_tiles
    gate_tiles = has_ragged or has_phantom

    acc_rows = 8 if (row_tile % 8 == 0) else 1

    kernel = functools.partial(
        _vfl_kernel,
        alpha=float(alpha), gamma=float(gamma),
        tiles_per_slice=tiles_per_slice, row_tile=row_tile,
        valid_rows=M, total_tiles=total_tiles,
        binary_label=binary_label, gate_tiles=gate_tiles)

    if has_phantom:
        # Keep phantom-tile DMAs inside the array; their contribution is gated
        # off in-kernel, so the clamp never double-counts.
        def row_index(s, t):
            return (jnp.minimum(s * tiles_per_slice + t, total_tiles - 1), 0)
    else:
        def row_index(s, t):
            return (s * tiles_per_slice + t, 0)

    in_spec = pl.BlockSpec((row_tile, C), row_index)

    # Always set the scoped-VMEM limit (double-buffered inputs + headroom).
    vmem_limit = int(min(max(2 * row_tile * bytes_per_row + (8 << 20), 16 << 20),
                         48 << 20))

    partials = pl.pallas_call(
        kernel,
        out_shape=jax.ShapeDtypeStruct((num_slices, 1, C), jnp.float32),
        grid_spec=pltpu.PrefetchScalarGridSpec(
            num_scalar_prefetch=0,
            grid=(num_slices, tiles_per_slice),
            in_specs=[in_spec, in_spec, in_spec],
            out_specs=pl.BlockSpec((1, 1, C), lambda s, t: (s, 0, 0)),
            scratch_shapes=[pltpu.VMEM((acc_rows, C), jnp.float32)],
        ),
        compiler_params=pltpu.CompilerParams(
            dimension_semantics=("parallel", "arbitrary"),
            vmem_limit_bytes=vmem_limit),
    )(pred2, gt2, lbl2)

    # Single cross-lane reduce of the lane-dense per-slice partial sums.
    return jnp.sum(partials)


def varifocal_loss_ref(pred_score, gt_score, label, alpha=1.25, gamma=2.0):
    x = pred_score.astype(jnp.float32)
    z = gt_score.astype(jnp.float32)
    lbl = label.astype(jnp.float32)
    weight = alpha * jax.nn.sigmoid(x) ** gamma * (1.0 - lbl) + z * lbl
    bce = jnp.maximum(x, 0.0) - x * z + jnp.log1p(jnp.exp(-jnp.abs(x)))
    return jnp.sum(bce * weight)


if __name__ == "__main__":
    key = jax.random.PRNGKey(0)
    k1, k2, k3 = jax.random.split(key, 3)

    B, A, C = 2, 84, 128   # batch, anchors, classes (M = 168: not tile-aligned)
    pred_score = jax.random.normal(k1, (B, A, C), dtype=jnp.float32) * 2.0
    gt_score = jax.random.uniform(k2, (B, A, C), dtype=jnp.float32)
    label = jax.random.bernoulli(k3, p=0.3, shape=(B, A, C))   # bool indicator

    ref = varifocal_loss_ref(pred_score, gt_score, label)

    # Default config: single full-array block, binary-label select path.
    loss = jax.block_until_ready(varifocal_loss(pred_score, gt_score, label))
    assert jnp.allclose(loss, ref, rtol=1e-4, atol=1e-2), (loss, ref)

    # Tiled + two-slice config: exercises grid accumulation, ragged-last-tile
    # masking and phantom-tile gating — all without any wrapper-side padding.
    loss2 = jax.block_until_ready(
        varifocal_loss(pred_score, gt_score, label, row_tile=64, num_slices=2))
    assert jnp.allclose(loss2, ref, rtol=1e-4, atol=1e-2), (loss2, ref)

    # Soft (float) labels: exact arithmetic blend path, ragged tiling.
    soft_label = label.astype(jnp.float32) * 0.7
    ref3 = varifocal_loss_ref(pred_score, gt_score, soft_label)
    loss3 = jax.block_until_ready(
        varifocal_loss(pred_score, gt_score, soft_label, row_tile=96))
    assert jnp.allclose(loss3, ref3, rtol=1e-4, atol=1e-2), (loss3, ref3)

    print("KERNEL_OK")
</pallas_src>

<mosaic_0001>
module attributes {stable_mosaic.version = 11 : i64} {
  func.func @_vfl_kernel(%arg0: i32, %arg1: i32, %arg2: memref<168x128xf32, #tpu.memory_space<vmem>>, %arg3: memref<168x128xf32, #tpu.memory_space<vmem>>, %arg4: memref<168x128xi8, #tpu.memory_space<vmem>>, %arg5: memref<1x1x128xf32, #tpu.memory_space<vmem>>, %arg6: memref<8x128xf32, #tpu.memory_space<vmem>>) attributes {dimension_semantics = [#tpu.dimension_semantics<parallel>, #tpu.dimension_semantics<arbitrary>], iteration_bounds = array<i64: 1, 1>, scalar_prefetch = 0 : i64, scratch_operands = 1 : i64, tpu.core_type = #tpu.core_type<tc>, window_params = [{transform_indices = @transform_0, window_bounds = array<i64: 168, 128>}, {transform_indices = @transform_1, window_bounds = array<i64: 168, 128>}, {transform_indices = @transform_2, window_bounds = array<i64: 168, 128>}, {transform_indices = @transform_3, window_bounds = array<i64: 1, 1, 128>}]} {
    %c0_i32 = arith.constant 0 : i32
    %0 = arith.cmpi eq, %arg1, %c0_i32 : i32
    %1 = arith.extui %0 : i1 to i32
    %c0_i32_0 = arith.constant 0 : i32
    %2 = arith.cmpi ne, %1, %c0_i32_0 : i32
    scf.if %2 {
      %cst_18 = arith.constant 0.000000e+00 : f32
      %39 = vector.broadcast %cst_18 : f32 to vector<8x128xf32>
      %c0_19 = arith.constant 0 : index
      %c0_20 = arith.constant 0 : index
      %40 = vector.load %arg6[%c0_19, %c0_20] : memref<8x128xf32, #tpu.memory_space<vmem>>, vector<8x128xf32>
      tpu.vector_store %arg6[%c0_19, %c0_20], %39 {strides = array<i32>} : memref<8x128xf32, #tpu.memory_space<vmem>>, vector<8x128xf32>,
    } else {
    }
    %c0 = arith.constant 0 : index
    %c0_1 = arith.constant 0 : index
    %3 = vector.load %arg2[%c0, %c0_1] : memref<168x128xf32, #tpu.memory_space<vmem>>, vector<168x128xf32>
    %c0_2 = arith.constant 0 : index
    %c0_3 = arith.constant 0 : index
    %4 = vector.load %arg3[%c0_2, %c0_3] : memref<168x128xf32, #tpu.memory_space<vmem>>, vector<168x128xf32>
    %5 = math.absf %3 : vector<168x128xf32>
    %cst = arith.constant 0.000000e+00 : f32
    %6 = vector.broadcast %cst : f32 to vector<168x128xf32>
    %7 = arith.subf %6, %5 : vector<168x128xf32>
    %8 = math.exp %7 : vector<168x128xf32>
    %cst_4 = arith.constant 1.000000e+00 : f32
    %9 = vector.broadcast %cst_4 : f32 to vector<168x128xf32>
    %10 = arith.addf %9, %8 : vector<168x128xf32>
    %cst_5 = arith.constant 1.000000e+00 : f32
    %11 = vector.broadcast %cst_5 : f32 to vector<168x128xf32>
    %12 = arith.divf %11, %10 : vector<168x128xf32>
    %cst_6 = arith.constant 0.000000e+00 : f32
    %13 = vector.broadcast %cst_6 : f32 to vector<168x128xf32>
    %14 = arith.cmpf oge, %3, %13 : vector<168x128xf32>
    %15 = arith.mulf %8, %12 : vector<168x128xf32>
    %16 = arith.select %14, %12, %15 : vector<168x128xi1>, vector<168x128xf32>
    %17 = math.log1p %8 : vector<168x128xf32>
    %18 = arith.mulf %16, %16 : vector<168x128xf32>
    %cst_7 = arith.constant 1.250000e+00 : f32
    %19 = vector.broadcast %cst_7 : f32 to vector<168x128xf32>
    %20 = arith.mulf %19, %18 : vector<168x128xf32>
    %c0_8 = arith.constant 0 : index
    %c0_9 = arith.constant 0 : index
    %21 = vector.load %arg4[%c0_8, %c0_9] : memref<168x128xi8, #tpu.memory_space<vmem>>, vector<168x128xi8>
    %c0_i8 = arith.constant 0 : i8
    %22 = vector.broadcast %c0_i8 : i8 to vector<168x128xi8>
    %23 = arith.cmpi ne, %21, %22 : vector<168x128xi8>
    %24 = arith.select %23, %4, %20 : vector<168x128xi1>, vector<168x128xf32>
    %cst_10 = arith.constant 0.000000e+00 : f32
    %25 = vector.broadcast %cst_10 : f32 to vector<168x128xf32>
    %26 = arith.maximumf %3, %25 : vector<168x128xf32>
    %27 = arith.mulf %3, %4 : vector<168x128xf32>
    %28 = arith.subf %26, %27 : vector<168x128xf32>
    %29 = arith.addf %28, %17 : vector<168x128xf32>
    %30 = arith.mulf %29, %24 : vector<168x128xf32>
    %c0_11 = arith.constant 0 : index
    %c0_12 = arith.constant 0 : index
    %31 = vector.load %arg6[%c0_11, %c0_12] : memref<8x128xf32, #tpu.memory_space<vmem>>, vector<8x128xf32>
    %32 = vector.shape_cast %30 : vector<168x128xf32> to vector<21x8x128xf32>
    %cst_13 = arith.constant dense<0.000000e+00> : vector<8x128xf32>
    %33 = vector.multi_reduction <add>, %32, %cst_13 [0] : vector<21x8x128xf32> to vector<8x128xf32>
    %34 = arith.addf %31, %33 : vector<8x128xf32>
    %c0_14 = arith.constant 0 : index
    %c0_15 = arith.constant 0 : index
    %35 = vector.load %arg6[%c0_14, %c0_15] : memref<8x128xf32, #tpu.memory_space<vmem>>, vector<8x128xf32>
    tpu.vector_store %arg6[%c0_14, %c0_15], %34 {strides = array<i32>} : memref<8x128xf32, #tpu.memory_space<vmem>>, vector<8x128xf32>,
    %c0_i32_16 = arith.constant 0 : i32
    %36 = arith.cmpi eq, %arg1, %c0_i32_16 : i32
    %37 = arith.extui %36 : i1 to i32
    %c0_i32_17 = arith.constant 0 : i32
    %38 = arith.cmpi ne, %37, %c0_i32_17 : i32
    scf.if %38 {
      %c0_18 = arith.constant 0 : index
      %c0_19 = arith.constant 0 : index
      %39 = vector.load %arg6[%c0_18, %c0_19] : memref<8x128xf32, #tpu.memory_space<vmem>>, vector<8x128xf32>
      %cst_20 = arith.constant dense<0.000000e+00> : vector<128xf32>
      %40 = vector.multi_reduction <add>, %39, %cst_20 [0] : vector<8x128xf32> to vector<128xf32>
      %41 = vector.shape_cast %40 : vector<128xf32> to vector<1x128xf32>
      %42 = vector.shape_cast %41 : vector<1x128xf32> to vector<1x1x128xf32>
      %c0_21 = arith.constant 0 : index
      %c0_22 = arith.constant 0 : index
      %c0_23 = arith.constant 0 : index
      %43 = vector.load %arg5[%c0_21, %c0_22, %c0_23] : memref<1x1x128xf32, #tpu.memory_space<vmem>>, vector<1x1x128xf32>
      tpu.vector_store %arg5[%c0_21, %c0_22, %c0_23], %42 {strides = array<i32>} : memref<1x1x128xf32, #tpu.memory_space<vmem>>, vector<1x1x128xf32>,
    } else {
    }
    return
  }
  func.func @transform_0(%arg0: i32, %arg1: i32) -> (i32, i32) {
    %c1_i32 = arith.constant 1 : i32
    %0 = arith.muli %arg0, %c1_i32 : i32
    %1 = arith.addi %0, %arg1 : i32
    %c0_i32 = arith.constant 0 : i32
    %c0_i32_0 = arith.constant 0 : i32
    return %1, %c0_i32 : i32, i32
  }
  func.func @transform_1(%arg0: i32, %arg1: i32) -> (i32, i32) {
    %c1_i32 = arith.constant 1 : i32
    %0 = arith.muli %arg0, %c1_i32 : i32
    %1 = arith.addi %0, %arg1 : i32
    %c0_i32 = arith.constant 0 : i32
    %c0_i32_0 = arith.constant 0 : i32
    return %1, %c0_i32 : i32, i32
  }
  func.func @transform_2(%arg0: i32, %arg1: i32) -> (i32, i32) {
    %c1_i32 = arith.constant 1 : i32
    %0 = arith.muli %arg0, %c1_i32 : i32
    %1 = arith.addi %0, %arg1 : i32
    %c0_i32 = arith.constant 0 : i32
    %c0_i32_0 = arith.constant 0 : i32
    return %1, %c0_i32 : i32, i32
  }
  func.func @transform_3(%arg0: i32, %arg1: i32) -> (i32, i32, i32) {
    %c0_i32 = arith.constant 0 : i32
    %c0_i32_0 = arith.constant 0 : i32
    %c0_i32_1 = arith.constant 0 : i32
    return %arg0, %c0_i32, %c0_i32_0 : i32, i32, i32
  }
}

</mosaic_0001>

<llo_original>
// kernel: tpu_custom_call.1
$region0: #{tpu_custom_call.1}
  #allocation0 [shape = 'u32[]', space=smem, size = 0x4, offset = 0x4, fixed_abs, tag = 'smem constant byte address 0x4 - core index']
  #allocation1 [shape = 'u32[144,128]{1,0:T(1,128)}', space=vmem, size = 0x12000, scoped, tag = 'internal scratch']
  #allocation2 [shape = 'f32[8,128]{1,0:T(8,128)}', space=vmem, size = 0x1000, scoped, tag = 'scratch operand']
  %s0 = inlined_call_operand.hbm [shape: f32[168,128], index: 0, kind: input, shape index: {}]
  %s1 = inlined_call_operand.hbm [shape: f32[168,128], index: 1, kind: input, shape index: {}]
  %s2 = inlined_call_operand.hbm [shape: s8[168,128], index: 2, kind: input, shape index: {}]
  %s3 = inlined_call_operand.hbm [shape: f32[1,1,128], index: 3, kind: output, shape index: {}]
  %s4 = sld [smem:[#allocation0]]
  $region42: #{tpu_custom_call.1} parent=0
    _
  %s6 = ssub.s32 1, %s4
  %s7 = scalar_select 0, %s6, %s4
  $region1: #{tpu_custom_call.1} parent=0
    #allocation3 [shape = 'u8[86016]{0}', space=vmem, size = 0x15000, scoped, tag = 'input window, operand 0, single buffered']
    #allocation4 [shape = 's32[1]{0}', space=sflag, size = 0x4, scoped, tag = 'scoped memory for tpu_custom_call.1']
    #allocation5 [shape = 's32[1]{0}', space=sflag, size = 0x4, scoped, tag = 'scoped memory for tpu_custom_call.1']
    #allocation6 [shape = 'u8[86016]{0}', space=vmem, size = 0x15000, scoped, tag = 'input window, operand 1, single buffered']
    #allocation7 [shape = 's32[1]{0}', space=sflag, size = 0x4, scoped, tag = 'scoped memory for tpu_custom_call.1']
    #allocation8 [shape = 'u8[21504]{0}', space=vmem, size = 0x5400, scoped, tag = 'input window, operand 2, single buffered']
    #allocation9 [shape = 'u8[512]{0}', space=vmem, size = 0x400, scoped, tag = 'output window, operand 0, single buffered']
    %8 = vsyncpa [#allocation4], 0
    %9 = vsyncpa [#allocation7], 0
    %10 = vsyncpa [#allocation5], 0
    // Predicated region
    $region2: #{tpu_custom_call.1} parent=1 // pred_check
      _
    $region3: #{tpu_custom_call.1} parent=1 // pred_check_branch
      %12 = sbr.rel (0) target = $region5
    $region4: #{tpu_custom_call.1} parent=1 // pred_region
      %s13 = sadd.s32 0, 0
      %s14 = smul.u32 21, %s13
      %s16 = ssub.s32 2688, 2688
      %17 = vsyncadd [#allocation4], %s16
      %s18 = smul.addr %s14, 128
      %s19 = scalar_lea.hbm %s0, %s18
      %s20 = sshll.u32 [#allocation3], 4
      %s21 = int_to_ptr.vmem [resolvable:$true] %s20
      %26 = dma.hbm_to_vmem [thread:$0]  %s19, 2688, %s21, [#allocation4], 128, 128, 8
    $region5: #{tpu_custom_call.1} parent=1 // pred_fallthru
      _
    // Predicated region
    $region6: #{tpu_custom_call.1} parent=1 // pred_check
      _
    $region7: #{tpu_custom_call.1} parent=1 // pred_check_branch
      %28 = sbr.rel (0) target = $region9
    $region8: #{tpu_custom_call.1} parent=1 // pred_region
      %s29 = sadd.s32 0, 0
      %s30 = smul.u32 21, %s29
      %s32 = ssub.s32 2688, 2688
      %33 = vsyncadd [#allocation7], %s32
      %s34 = smul.addr %s30, 128
      %s35 = scalar_lea.hbm %s1, %s34
      %s36 = sshll.u32 [#allocation6], 4
      %s37 = int_to_ptr.vmem [resolvable:$true] %s36
      %42 = dma.hbm_to_vmem [thread:$0]  %s35, 2688, %s37, [#allocation7], 128, 128, 8
    $region9: #{tpu_custom_call.1} parent=1 // pred_fallthru
      _
    // Predicated region
    $region10: #{tpu_custom_call.1} parent=1 // pred_check
      _
    $region11: #{tpu_custom_call.1} parent=1 // pred_check_branch
      %44 = sbr.rel (0) target = $region13
    $region12: #{tpu_custom_call.1} parent=1 // pred_region
      %s45 = sadd.s32 0, 0
      %s46 = smul.u32 21, %s45
      %s48 = ssub.s32 672, 672
      %49 = vsyncadd [#allocation7], %s48
      %s50 = smul.addr %s46, 32
      %s51 = scalar_lea.hbm %s2, %s50
      %s52 = sshll.u32 [#allocation8], 4
      %s53 = int_to_ptr.vmem [resolvable:$true] %s52
      %58 = dma.hbm_to_vmem [thread:$0]  %s51, 672, %s53, [#allocation7], 32, 32, 2
    $region13: #{tpu_custom_call.1} parent=1 // pred_fallthru
      _
    // Predicated region
    $region14: #{tpu_custom_call.1} parent=1 // pred_check
      _
    $region15: #{tpu_custom_call.1} parent=1 // pred_check_branch
      %60 = sbr.rel (0) target = $region17
    $region16: #{tpu_custom_call.1} parent=1 // pred_region
      %61 = dma.done [#allocation4], 2688
    $region17: #{tpu_custom_call.1} parent=1 // pred_fallthru
      _
    // Predicated region
    $region18: #{tpu_custom_call.1} parent=1 // pred_check
      _
    $region19: #{tpu_custom_call.1} parent=1 // pred_check_branch
      %63 = sbr.rel (0) target = $region21
    $region20: #{tpu_custom_call.1} parent=1 // pred_region
      %64 = dma.done [#allocation7], 2688
    $region21: #{tpu_custom_call.1} parent=1 // pred_fallthru
      _
    // Predicated region
    $region22: #{tpu_custom_call.1} parent=1 // pred_check
      _
    $region23: #{tpu_custom_call.1} parent=1 // pred_check_branch
      %66 = sbr.rel (0) target = $region25
    $region24: #{tpu_custom_call.1} parent=1 // pred_region
      %67 = dma.done [#allocation7], 672
    $region25: #{tpu_custom_call.1} parent=1 // pred_fallthru
      _
    %s68 = sadd.s32 0, 0
    %s69 = smul.u32 21, %s68
    %s70 = sadd.s32 0, 0
    %s71 = smul.u32 21, %s70
    %s72 = sadd.s32 0, 0
    %s73 = smul.u32 21, %s72
    %p76 = scmp.eq.s32.totalorder 0, 0
    // Predicated region
    $region26: #{tpu_custom_call.1} parent=1 // pred_check
      %p77 = pneg %p76
    $region27: #{tpu_custom_call.1} parent=1 // pred_check_branch
      %79 = sbr.rel (%p77) target = $region29
    $region28: #{tpu_custom_call.1} parent=1 // pred_region
      %80 = vst [vmem:[#allocation2] sm:$0xff] 0.0
    $region29: #{tpu_custom_call.1} parent=1 // pred_fallthru
      _
    %v81 = vld [vmem:[#allocation3] sm:$0xff]
    %v82 = vld [vmem:[#allocation3 + $0x8] sm:$0xff]
    %v83 = vld [vmem:[#allocation3 + $0x10] sm:$0xff]
    %v84 = vld [vmem:[#allocation3 + $0x18] sm:$0xff]
    %v85 = vld [vmem:[#allocation3 + $0x20] sm:$0xff]
    %v86 = vld [vmem:[#allocation3 + $0x28] sm:$0xff]
    %v87 = vld [vmem:[#allocation3 + $0x30] sm:$0xff]
    %v88 = vld [vmem:[#allocation3 + $0x38] sm:$0xff]
    %v89 = vld [vmem:[#allocation3 + $0x40] sm:$0xff]
    %v90 = vld [vmem:[#allocation3 + $0x48] sm:$0xff]
    %v91 = vld [vmem:[#allocation3 + $0x50] sm:$0xff]
    %v92 = vld [vmem:[#allocation3 + $0x58] sm:$0xff]
    %v93 = vld [vmem:[#allocation3 + $0x60] sm:$0xff]
    %v94 = vld [vmem:[#allocation3 + $0x68] sm:$0xff]
    %v95 = vld [vmem:[#allocation3 + $0x70] sm:$0xff]
    %v96 = vld [vmem:[#allocation3 + $0x78] sm:$0xff]
    %v97 = vld [vmem:[#allocation3 + $0x80] sm:$0xff]
    %v98 = vld [vmem:[#allocation3 + $0x88] sm:$0xff]
    %v99 = vld [vmem:[#allocation3 + $0x90] sm:$0xff]
    %v100 = vld [vmem:[#allocation3 + $0x98] sm:$0xff]
    %v101 = vld [vmem:[#allocation3 + $0xa0] sm:$0xff]
    %v102 = vld [vmem:[#allocation6] sm:$0xff]
    %v103 = vld [vmem:[#allocation6 + $0x8] sm:$0xff]
    %v104 = vld [vmem:[#allocation6 + $0x10] sm:$0xff]
    %v105 = vld [vmem:[#allocation6 + $0x18] sm:$0xff]
    %v106 = vld [vmem:[#allocation6 + $0x20] sm:$0xff]
    %v107 = vld [vmem:[#allocation6 + $0x28] sm:$0xff]
    %v108 = vld [vmem:[#allocation6 + $0x30] sm:$0xff]
    %v109 = vld [vmem:[#allocation6 + $0x38] sm:$0xff]
    %v110 = vld [vmem:[#allocation6 + $0x40] sm:$0xff]
    %v111 = vld [vmem:[#allocation6 + $0x48] sm:$0xff]
    %v112 = vld [vmem:[#allocation6 + $0x50] sm:$0xff]
    %v113 = vld [vmem:[#allocation6 + $0x58] sm:$0xff]
    %v114 = vld [vmem:[#allocation6 + $0x60] sm:$0xff]
    %v115 = vld [vmem:[#allocation6 + $0x68] sm:$0xff]
    %v116 = vld [vmem:[#allocation6 + $0x70] sm:$0xff]
    %v117 = vld [vmem:[#allocation6 + $0x78] sm:$0xff]
    %v118 = vld [vmem:[#allocation6 + $0x80] sm:$0xff]
    %v119 = vld [vmem:[#allocation6 + $0x88] sm:$0xff]
    %v120 = vld [vmem:[#allocation6 + $0x90] sm:$0xff]
    %v121 = vld [vmem:[#allocation6 + $0x98] sm:$0xff]
    %v122 = vld [vmem:[#allocation6 + $0xa0] sm:$0xff]
    %v123 = vand.u32 2147483647, %v81
    %v124 = vand.u32 2147483647, %v82
    %v125 = vand.u32 2147483647, %v83
    %v126 = vand.u32 2147483647, %v84
    %v127 = vand.u32 2147483647, %v85
    %v128 = vand.u32 2147483647, %v86
    %v129 = vand.u32 2147483647, %v87
    %v130 = vand.u32 2147483647, %v88
    %v131 = vand.u32 2147483647, %v89
    %v132 = vand.u32 2147483647, %v90
    %v133 = vand.u32 2147483647, %v91
    %v134 = vand.u32 2147483647, %v92
    %v135 = vand.u32 2147483647, %v93
    %v136 = vand.u32 2147483647, %v94
    %v137 = vand.u32 2147483647, %v95
    %v138 = vand.u32 2147483647, %v96
    %v139 = vand.u32 2147483647, %v97
    %v140 = vand.u32 2147483647, %v98
    %v141 = vand.u32 2147483647, %v99
    %v142 = vand.u32 2147483647, %v100
    %v143 = vand.u32 2147483647, %v101
    %v144 = vsub.f32 0.0, %v123
    %v145 = vsub.f32 0.0, %v124
    %v146 = vsub.f32 0.0, %v125
    %v147 = vsub.f32 0.0, %v126
    %v148 = vsub.f32 0.0, %v127
    %v149 = vsub.f32 0.0, %v128
    %v150 = vsub.f32 0.0, %v129
    %v151 = vsub.f32 0.0, %v130
    %v152 = vsub.f32 0.0, %v131
    %v153 = vsub.f32 0.0, %v132
    %v154 = vsub.f32 0.0, %v133
    %v155 = vsub.f32 0.0, %v134
    %v156 = vsub.f32 0.0, %v135
    %v157 = vsub.f32 0.0, %v136
    %v158 = vsub.f32 0.0, %v137
    %v159 = vsub.f32 0.0, %v138
    %v160 = vsub.f32 0.0, %v139
    %v161 = vsub.f32 0.0, %v140
    %v162 = vsub.f32 0.0, %v141
    %v163 = vsub.f32 0.0, %v142
    %v164 = vsub.f32 0.0, %v143
    %v165 = vmul.f32 %v144, 1.442695
    %v166 = vpow.pop %v165
    %v167 = vmul.f32 %v145, 1.442695
    %v168 = vpow.pop %v167
    %v169 = vmul.f32 %v146, 1.442695
    %v170 = vpow.pop %v169
    %v171 = vmul.f32 %v147, 1.442695
    %v172 = vpow.pop %v171
    %v173 = vmul.f32 %v148, 1.442695
    %v174 = vpow.pop %v173
    %v175 = vmul.f32 %v149, 1.442695
    %v176 = vpow.pop %v175
    %v177 = vmul.f32 %v150, 1.442695
    %v178 = vpow.pop %v177
    %v179 = vmul.f32 %v151, 1.442695
    %v180 = vpow.pop %v179
    %v181 = vmul.f32 %v152, 1.442695
    %v182 = vpow.pop %v181
    %v183 = vmul.f32 %v153, 1.442695
    %v184 = vpow.pop %v183
    %v185 = vmul.f32 %v154, 1.442695
    %v186 = vpow.pop %v185
    %v187 = vmul.f32 %v155, 1.442695
    %v188 = vpow.pop %v187
    %v189 = vmul.f32 %v156, 1.442695
    %v190 = vpow.pop %v189
    %v191 = vmul.f32 %v157, 1.442695
    %v192 = vpow.pop %v191
    %v193 = vmul.f32 %v158, 1.442695
    %v194 = vpow.pop %v193
    %v195 = vmul.f32 %v159, 1.442695
    %v196 = vpow.pop %v195
    %v197 = vmul.f32 %v160, 1.442695
    %v198 = vpow.pop %v197
    %v199 = vmul.f32 %v161, 1.442695
    %v200 = vpow.pop %v199
    %v201 = vmul.f32 %v162, 1.442695
    %v202 = vpow.pop %v201
    %v203 = vmul.f32 %v163, 1.442695
    %v204 = vpow.pop %v203
    %v205 = vmul.f32 %v164, 1.442695
    %v206 = vpow.pop %v205
    %v207 = vadd.f32 %v166, 1.0
    %v208 = vadd.f32 %v168, 1.0
    %v209 = vadd.f32 %v170, 1.0
    %v210 = vadd.f32 %v172, 1.0
    %v211 = vadd.f32 %v174, 1.0
    %v212 = vadd.f32 %v176, 1.0
    %v213 = vadd.f32 %v178, 1.0
    %v214 = vadd.f32 %v180, 1.0
    %v215 = vadd.f32 %v182, 1.0
    %v216 = vadd.f32 %v184, 1.0
    %v217 = vadd.f32 %v186, 1.0
    %v218 = vadd.f32 %v188, 1.0
    %v219 = vadd.f32 %v190, 1.0
    %v220 = vadd.f32 %v192, 1.0
    %v221 = vadd.f32 %v194, 1.0
    %v222 = vadd.f32 %v196, 1.0
    %v223 = vadd.f32 %v198, 1.0
    %v224 = vadd.f32 %v200, 1.0
    %v225 = vadd.f32 %v202, 1.0
    %v226 = vadd.f32 %v204, 1.0
    %v227 = vadd.f32 %v206, 1.0
    %v228 = vrcp.pop %v207
    %v229 = vmul.f32 1.0, %v228
    %v230 = vrcp.pop %v208
    %v231 = vmul.f32 1.0, %v230
    %v232 = vrcp.pop %v209
    %v233 = vmul.f32 1.0, %v232
    %v234 = vrcp.pop %v210
    %v235 = vmul.f32 1.0, %v234
    %v236 = vrcp.pop %v211
    %v237 = vmul.f32 1.0, %v236
    %v238 = vrcp.pop %v212
    %v239 = vmul.f32 1.0, %v238
    %v240 = vrcp.pop %v213
    %v241 = vmul.f32 1.0, %v240
    %v242 = vrcp.pop %v214
    %v243 = vmul.f32 1.0, %v242
    %v244 = vrcp.pop %v215
    %v245 = vmul.f32 1.0, %v244
    %v246 = vrcp.pop %v216
    %v247 = vmul.f32 1.0, %v246
    %v248 = vrcp.pop %v217
    %v249 = vmul.f32 1.0, %v248
    %v250 = vrcp.pop %v218
    %v251 = vmul.f32 1.0, %v250
    %v252 = vrcp.pop %v219
    %v253 = vmul.f32 1.0, %v252
    %v254 = vrcp.pop %v220
    %v255 = vmul.f32 1.0, %v254
    %v256 = vrcp.pop %v221
    %v257 = vmul.f32 1.0, %v256
    %v258 = vrcp.pop %v222
    %v259 = vmul.f32 1.0, %v258
    %v260 = vrcp.pop %v223
    %v261 = vmul.f32 1.0, %v260
    %v262 = vrcp.pop %v224
    %v263 = vmul.f32 1.0, %v262
    %v264 = vrcp.pop %v225
    %v265 = vmul.f32 1.0, %v264
    %v266 = vrcp.pop %v226
    %v267 = vmul.f32 1.0, %v266
    %v268 = vrcp.pop %v227
    %v269 = vmul.f32 1.0, %v268
    %vm270 = vcmp.ge.f32.partialorder %v81, 0.0
    %vm271 = vcmp.ge.f32.partialorder %v82, 0.0
    %vm272 = vcmp.ge.f32.partialorder %v83, 0.0
    %vm273 = vcmp.ge.f32.partialorder %v84, 0.0
    %vm274 = vcmp.ge.f32.partialorder %v85, 0.0
    %vm275 = vcmp.ge.f32.partialorder %v86, 0.0
    %vm276 = vcmp.ge.f32.partialorder %v87, 0.0
    %vm277 = vcmp.ge.f32.partialorder %v88, 0.0
    %vm278 = vcmp.ge.f32.partialorder %v89, 0.0
    %vm279 = vcmp.ge.f32.partialorder %v90, 0.0
    %vm280 = vcmp.ge.f32.partialorder %v91, 0.0
    %vm281 = vcmp.ge.f32.partialorder %v92, 0.0
    %vm282 = vcmp.ge.f32.partialorder %v93, 0.0
    %vm283 = vcmp.ge.f32.partialorder %v94, 0.0
    %vm284 = vcmp.ge.f32.partialorder %v95, 0.0
    %vm285 = vcmp.ge.f32.partialorder %v96, 0.0
    %vm286 = vcmp.ge.f32.partialorder %v97, 0.0
    %vm287 = vcmp.ge.f32.partialorder %v98, 0.0
    %vm288 = vcmp.ge.f32.partialorder %v99, 0.0
    %vm289 = vcmp.ge.f32.partialorder %v100, 0.0
    %vm290 = vcmp.ge.f32.partialorder %v101, 0.0
    %v291 = vmul.f32 %v166, %v229
    %v292 = vmul.f32 %v168, %v231
    %v293 = vmul.f32 %v170, %v233
    %v294 = vmul.f32 %v172, %v235
    %v295 = vmul.f32 %v174, %v237
    %v296 = vmul.f32 %v176, %v239
    %v297 = vmul.f32 %v178, %v241
    %v298 = vmul.f32 %v180, %v243
    %v299 = vmul.f32 %v182, %v245
    %v300 = vmul.f32 %v184, %v247
    %v301 = vmul.f32 %v186, %v249
    %v302 = vmul.f32 %v188, %v251
    %v303 = vmul.f32 %v190, %v253
    %v304 = vmul.f32 %v192, %v255
    %v305 = vmul.f32 %v194, %v257
    %v306 = vmul.f32 %v196, %v259
    %v307 = vmul.f32 %v198, %v261
    %v308 = vmul.f32 %v200, %v263
    %v309 = vmul.f32 %v202, %v265
    %v310 = vmul.f32 %v204, %v267
    %v311 = vmul.f32 %v206, %v269
    %v312 = vsel %vm270, %v229, %v291
    %v313 = vsel %vm271, %v231, %v292
    %v314 = vsel %vm272, %v233, %v293
    %v315 = vsel %vm273, %v235, %v294
    %v316 = vsel %vm274, %v237, %v295
    %v317 = vsel %vm275, %v239, %v296
    %v318 = vsel %vm276, %v241, %v297
    %v319 = vsel %vm277, %v243, %v298
    %v320 = vsel %vm278, %v245, %v299
    %v321 = vsel %vm279, %v247, %v300
    %v322 = vsel %vm280, %v249, %v301
    %v323 = vsel %vm281, %v251, %v302
    %v324 = vsel %vm282, %v253, %v303
    %v325 = vsel %vm283, %v255, %v304
    %v326 = vsel %vm284, %v257, %v305
    %v327 = vsel %vm285, %v259, %v306
    %v328 = vsel %vm286, %v261, %v307
    %v329 = vsel %vm287, %v263, %v308
    %v330 = vsel %vm288, %v265, %v309
    %v331 = vsel %vm289, %v267, %v310
    %v332 = vsel %vm290, %v269, %v311
    %v333 = vadd.f32 %v166, 1.0
    %v334 = vlog2.pop %v333
    %v335 = vmul.f32 %v334, 0.6931472
    %v336 = vmul.f32 -0.5, %v166
    %v337 = vadd.f32 %v336, 1.0
    %v338 = vmul.f32 %v337, %v166
    %v339 = vand.u32 2147483647, %v166
    %vm340 = vcmp.lt.f32.partialorder %v339, 0.0004427343
    %v341 = vsel %vm340, %v338, %v335
    %v342 = vadd.f32 %v168, 1.0
    %v343 = vlog2.pop %v342
    %v344 = vmul.f32 %v343, 0.6931472
    %v345 = vmul.f32 -0.5, %v168
    %v346 = vadd.f32 %v345, 1.0
    %v347 = vmul.f32 %v346, %v168
    %v348 = vand.u32 2147483647, %v168
    %vm349 = vcmp.lt.f32.partialorder %v348, 0.0004427343
    %v350 = vsel %vm349, %v347, %v344
    %v351 = vadd.f32 %v170, 1.0
    %v352 = vlog2.pop %v351
    %v353 = vmul.f32 %v352, 0.6931472
    %v354 = vmul.f32 -0.5, %v170
    %v355 = vadd.f32 %v354, 1.0
    %v356 = vmul.f32 %v355, %v170
    %v357 = vand.u32 2147483647, %v170
    %vm358 = vcmp.lt.f32.partialorder %v357, 0.0004427343
    %v359 = vsel %vm358, %v356, %v353
    %v360 = vadd.f32 %v172, 1.0
    %v361 = vlog2.pop %v360
    %v362 = vmul.f32 %v361, 0.6931472
    %v363 = vmul.f32 -0.5, %v172
    %v364 = vadd.f32 %v363, 1.0
    %v365 = vmul.f32 %v364, %v172
    %v366 = vand.u32 2147483647, %v172
    %vm367 = vcmp.lt.f32.partialorder %v366, 0.0004427343
    %v368 = vsel %vm367, %v365, %v362
    %v369 = vadd.f32 %v174, 1.0
    %v370 = vlog2.pop %v369
    %v371 = vmul.f32 %v370, 0.6931472
    %v372 = vmul.f32 -0.5, %v174
    %v373 = vadd.f32 %v372, 1.0
    %v374 = vmul.f32 %v373, %v174
    %v375 = vand.u32 2147483647, %v174
    %vm376 = vcmp.lt.f32.partialorder %v375, 0.0004427343
    %v377 = vsel %vm376, %v374, %v371
    %v378 = vadd.f32 %v176, 1.0
    %v379 = vlog2.pop %v378
    %v380 = vmul.f32 %v379, 0.6931472
    %v381 = vmul.f32 -0.5, %v176
    %v382 = vadd.f32 %v381, 1.0
    %v383 = vmul.f32 %v382, %v176
    %v384 = vand.u32 2147483647, %v176
    %vm385 = vcmp.lt.f32.partialorder %v384, 0.0004427343
    %v386 = vsel %vm385, %v383, %v380
    %v387 = vadd.f32 %v178, 1.0
    %v388 = vlog2.pop %v387
    %v389 = vmul.f32 %v388, 0.6931472
    %v390 = vmul.f32 -0.5, %v178
    %v391 = vadd.f32 %v390, 1.0
    %v392 = vmul.f32 %v391, %v178
    %v393 = vand.u32 2147483647, %v178
    %vm394 = vcmp.lt.f32.partialorder %v393, 0.0004427343
    %v395 = vsel %vm394, %v392, %v389
    %v396 = vadd.f32 %v180, 1.0
    %v397 = vlog2.pop %v396
    %v398 = vmul.f32 %v397, 0.6931472
    %v399 = vmul.f32 -0.5, %v180
    %v400 = vadd.f32 %v399, 1.0
    %v401 = vmul.f32 %v400, %v180
    %v402 = vand.u32 2147483647, %v180
    %vm403 = vcmp.lt.f32.partialorder %v402, 0.0004427343
    %v404 = vsel %vm403, %v401, %v398
    %v405 = vadd.f32 %v182, 1.0
    %v406 = vlog2.pop %v405
    %v407 = vmul.f32 %v406, 0.6931472
    %v408 = vmul.f32 -0.5, %v182
    %v409 = vadd.f32 %v408, 1.0
    %v410 = vmul.f32 %v409, %v182
    %v411 = vand.u32 2147483647, %v182
    %vm412 = vcmp.lt.f32.partialorder %v411, 0.0004427343
    %v413 = vsel %vm412, %v410, %v407
    %v414 = vadd.f32 %v184, 1.0
    %v415 = vlog2.pop %v414
    %v416 = vmul.f32 %v415, 0.6931472
    %v417 = vmul.f32 -0.5, %v184
    %v418 = vadd.f32 %v417, 1.0
    %v419 = vmul.f32 %v418, %v184
    %v420 = vand.u32 2147483647, %v184
    %vm421 = vcmp.lt.f32.partialorder %v420, 0.0004427343
    %v422 = vsel %vm421, %v419, %v416
    %v423 = vadd.f32 %v186, 1.0
    %v424 = vlog2.pop %v423
    %v425 = vmul.f32 %v424, 0.6931472
    %v426 = vmul.f32 -0.5, %v186
    %v427 = vadd.f32 %v426, 1.0
    %v428 = vmul.f32 %v427, %v186
    %v429 = vand.u32 2147483647, %v186
    %vm430 = vcmp.lt.f32.partialorder %v429, 0.0004427343
    %v431 = vsel %vm430, %v428, %v425
    %v432 = vadd.f32 %v188, 1.0
    %v433 = vlog2.pop %v432
    %v434 = vmul.f32 %v433, 0.6931472
    %v435 = vmul.f32 -0.5, %v188
    %v436 = vadd.f32 %v435, 1.0
    %v437 = vmul.f32 %v436, %v188
    %v438 = vand.u32 2147483647, %v188
    %vm439 = vcmp.lt.f32.partialorder %v438, 0.0004427343
    %v440 = vsel %vm439, %v437, %v434
    %v441 = vadd.f32 %v190, 1.0
    %v442 = vlog2.pop %v441
    %v443 = vmul.f32 %v442, 0.6931472
    %v444 = vmul.f32 -0.5, %v190
    %v445 = vadd.f32 %v444, 1.0
    %v446 = vmul.f32 %v445, %v190
    %v447 = vand.u32 2147483647, %v190
    %vm448 = vcmp.lt.f32.partialorder %v447, 0.0004427343
    %v449 = vsel %vm448, %v446, %v443
    %v450 = vadd.f32 %v192, 1.0
    %v451 = vlog2.pop %v450
    %v452 = vmul.f32 %v451, 0.6931472
    %v453 = vmul.f32 -0.5, %v192
    %v454 = vadd.f32 %v453, 1.0
    %v455 = vmul.f32 %v454, %v192
    %v456 = vand.u32 2147483647, %v192
    %vm457 = vcmp.lt.f32.partialorder %v456, 0.0004427343
    %v458 = vsel %vm457, %v455, %v452
    %v459 = vadd.f32 %v194, 1.0
    %v460 = vlog2.pop %v459
    %v461 = vmul.f32 %v460, 0.6931472
    %v462 = vmul.f32 -0.5, %v194
    %v463 = vadd.f32 %v462, 1.0
    %v464 = vmul.f32 %v463, %v194
    %v465 = vand.u32 2147483647, %v194
    %vm466 = vcmp.lt.f32.partialorder %v465, 0.0004427343
    %v467 = vsel %vm466, %v464, %v461
    %v468 = vadd.f32 %v196, 1.0
    %v469 = vlog2.pop %v468
    %v470 = vmul.f32 %v469, 0.6931472
    %v471 = vmul.f32 -0.5, %v196
    %v472 = vadd.f32 %v471, 1.0
    %v473 = vmul.f32 %v472, %v196
    %v474 = vand.u32 2147483647, %v196
    %vm475 = vcmp.lt.f32.partialorder %v474, 0.0004427343
    %v476 = vsel %vm475, %v473, %v470
    %v477 = vadd.f32 %v198, 1.0
    %v478 = vlog2.pop %v477
    %v479 = vmul.f32 %v478, 0.6931472
    %v480 = vmul.f32 -0.5, %v198
    %v481 = vadd.f32 %v480, 1.0
    %v482 = vmul.f32 %v481, %v198
    %v483 = vand.u32 2147483647, %v198
    %vm484 = vcmp.lt.f32.partialorder %v483, 0.0004427343
    %v485 = vsel %vm484, %v482, %v479
    %v486 = vadd.f32 %v200, 1.0
    %v487 = vlog2.pop %v486
    %v488 = vmul.f32 %v487, 0.6931472
    %v489 = vmul.f32 -0.5, %v200
    %v490 = vadd.f32 %v489, 1.0
    %v491 = vmul.f32 %v490, %v200
    %v492 = vand.u32 2147483647, %v200
    %vm493 = vcmp.lt.f32.partialorder %v492, 0.0004427343
    %v494 = vsel %vm493, %v491, %v488
    %v495 = vadd.f32 %v202, 1.0
    %v496 = vlog2.pop %v495
    %v497 = vmul.f32 %v496, 0.6931472
    %v498 = vmul.f32 -0.5, %v202
    %v499 = vadd.f32 %v498, 1.0
    %v500 = vmul.f32 %v499, %v202
    %v501 = vand.u32 2147483647, %v202
    %vm502 = vcmp.lt.f32.partialorder %v501, 0.0004427343
    %v503 = vsel %vm502, %v500, %v497
    %v504 = vadd.f32 %v204, 1.0
    %v505 = vlog2.pop %v504
    %v506 = vmul.f32 %v505, 0.6931472
    %v507 = vmul.f32 -0.5, %v204
    %v508 = vadd.f32 %v507, 1.0
    %v509 = vmul.f32 %v508, %v204
    %v510 = vand.u32 2147483647, %v204
    %vm511 = vcmp.lt.f32.partialorder %v510, 0.0004427343
    %v512 = vsel %vm511, %v509, %v506
    %v513 = vadd.f32 %v206, 1.0
    %v514 = vlog2.pop %v513
    %v515 = vmul.f32 %v514, 0.6931472
    %v516 = vmul.f32 -0.5, %v206
    %v517 = vadd.f32 %v516, 1.0
    %v518 = vmul.f32 %v517, %v206
    %v519 = vand.u32 2147483647, %v206
    %vm520 = vcmp.lt.f32.partialorder %v519, 0.0004427343
    %v521 = vsel %vm520, %v518, %v515
    %v522 = vmul.f32 %v312, %v312
    %v523 = vmul.f32 %v313, %v313
    %v524 = vmul.f32 %v314, %v314
    %v525 = vmul.f32 %v315, %v315
    %v526 = vmul.f32 %v316, %v316
    %v527 = vmul.f32 %v317, %v317
    %v528 = vmul.f32 %v318, %v318
    %v529 = vmul.f32 %v319, %v319
    %v530 = vmul.f32 %v320, %v320
    %v531 = vmul.f32 %v321, %v321
    %v532 = vmul.f32 %v322, %v322
    %v533 = vmul.f32 %v323, %v323
    %v534 = vmul.f32 %v324, %v324
    %v535 = vmul.f32 %v325, %v325
    %v536 = vmul.f32 %v326, %v326
    %v537 = vmul.f32 %v327, %v327
    %v538 = vmul.f32 %v328, %v328
    %v539 = vmul.f32 %v329, %v329
    %v540 = vmul.f32 %v330, %v330
    %v541 = vmul.f32 %v331, %v331
    %v542 = vmul.f32 %v332, %v332
    %v543 = vmul.f32 %v522, 1.25
    %v544 = vmul.f32 %v523, 1.25
    %v545 = vmul.f32 %v524, 1.25
    %v546 = vmul.f32 %v525, 1.25
    %v547 = vmul.f32 %v526, 1.25
    %v548 = vmul.f32 %v527, 1.25
    %v549 = vmul.f32 %v528, 1.25
    %v550 = vmul.f32 %v529, 1.25
    %v551 = vmul.f32 %v530, 1.25
    %v552 = vmul.f32 %v531, 1.25
    %v553 = vmul.f32 %v532, 1.25
    %v554 = vmul.f32 %v533, 1.25
    %v555 = vmul.f32 %v534, 1.25
    %v556 = vmul.f32 %v535, 1.25
    %v557 = vmul.f32 %v536, 1.25
    %v558 = vmul.f32 %v537, 1.25
    %v559 = vmul.f32 %v538, 1.25
    %v560 = vmul.f32 %v539, 1.25
    %v561 = vmul.f32 %v540, 1.25
    %v562 = vmul.f32 %v541, 1.25
    %v563 = vmul.f32 %v542, 1.25
    %v564 = vld [vmem:[#allocation8] sm:$0x3]
    %v565 = vld [vmem:[#allocation8 + $0x2] sm:$0x3]
    %v566 = vld [vmem:[#allocation8 + $0x4] sm:$0x3]
    %v567 = vld [vmem:[#allocation8 + $0x6] sm:$0x3]
    %v568 = vld [vmem:[#allocation8 + $0x8] sm:$0x3]
    %v569 = vld [vmem:[#allocation8 + $0xa] sm:$0x3]
    %v570 = vld [vmem:[#allocation8 + $0xc] sm:$0x3]
    %v571 = vld [vmem:[#allocation8 + $0xe] sm:$0x3]
    %v572 = vld [vmem:[#allocation8 + $0x10] sm:$0x3]
    %v573 = vld [vmem:[#allocation8 + $0x12] sm:$0x3]
    %v574 = vld [vmem:[#allocation8 + $0x14] sm:$0x3]
    %v575 = vld [vmem:[#allocation8 + $0x16] sm:$0x3]
    %v576 = vld [vmem:[#allocation8 + $0x18] sm:$0x3]
    %v577 = vld [vmem:[#allocation8 + $0x1a] sm:$0x3]
    %v578 = vld [vmem:[#allocation8 + $0x1c] sm:$0x3]
    %v579 = vld [vmem:[#allocation8 + $0x1e] sm:$0x3]
    %v580 = vld [vmem:[#allocation8 + $0x20] sm:$0x3]
    %v581 = vld [vmem:[#allocation8 + $0x22] sm:$0x3]
    %v582 = vld [vmem:[#allocation8 + $0x24] sm:$0x3]
    %v583 = vld [vmem:[#allocation8 + $0x26] sm:$0x3]
    %v584 = vld [vmem:[#allocation8 + $0x28] sm:$0x3]
    %vm585 = vnez %v564
    %vm586 = vnez %v565
    %vm587 = vnez %v566
    %vm588 = vnez %v567
    %vm589 = vnez %v568
    %vm590 = vnez %v569
    %vm591 = vnez %v570
    %vm592 = vnez %v571
    %vm593 = vnez %v572
    %vm594 = vnez %v573
    %vm595 = vnez %v574
    %vm596 = vnez %v575
    %vm597 = vnez %v576
    %vm598 = vnez %v577
    %vm599 = vnez %v578
    %vm600 = vnez %v579
    %vm601 = vnez %v580
    %vm602 = vnez %v581
    %vm603 = vnez %v582
    %vm604 = vnez %v583
    %vm605 = vnez %v584
    %v606 = vsel %vm585, 16843009, 0
    %v607 = vsel %vm586, 16843009, 0
    %v608 = vsel %vm587, 16843009, 0
    %v609 = vsel %vm588, 16843009, 0
    %v610 = vsel %vm589, 16843009, 0
    %v611 = vsel %vm590, 16843009, 0
    %v612 = vsel %vm591, 16843009, 0
    %v613 = vsel %vm592, 16843009, 0
    %v614 = vsel %vm593, 16843009, 0
    %v615 = vsel %vm594, 16843009, 0
    %v616 = vsel %vm595, 16843009, 0
    %v617 = vsel %vm596, 16843009, 0
    %v618 = vsel %vm597, 16843009, 0
    %v619 = vsel %vm598, 16843009, 0
    %v620 = vsel %vm599, 16843009, 0
    %v621 = vsel %vm600, 16843009, 0
    %v622 = vsel %vm601, 16843009, 0
    %v623 = vsel %vm602, 16843009, 0
    %v624 = vsel %vm603, 16843009, 0
    %v625 = vsel %vm604, 16843009, 0
    %v626 = vsel %vm605, 16843009, 0
    %v627 = vunpack.c.0.s8 %v606
    %v628 = vunpack.c.0.s8 %v607
    %v629 = vunpack.c.0.s8 %v608
    %v630 = vunpack.c.0.s8 %v609
    %v631 = vunpack.c.0.s8 %v610
    %v632 = vunpack.c.0.s8 %v611
    %v633 = vunpack.c.0.s8 %v612
    %v634 = vunpack.c.0.s8 %v613
    %v635 = vunpack.c.0.s8 %v614
    %v636 = vunpack.c.0.s8 %v615
    %v637 = vunpack.c.0.s8 %v616
    %v638 = vunpack.c.0.s8 %v617
    %v639 = vunpack.c.0.s8 %v618
    %v640 = vunpack.c.0.s8 %v619
    %v641 = vunpack.c.0.s8 %v620
    %v642 = vunpack.c.0.s8 %v621
    %v643 = vunpack.c.0.s8 %v622
    %v644 = vunpack.c.0.s8 %v623
    %v645 = vunpack.c.0.s8 %v624
    %v646 = vunpack.c.0.s8 %v625
    %v647 = vunpack.c.0.s8 %v626
    %vm648 = vcmp.ne.s32.totalorder %v627, 0
    %vm649 = vcmp.ne.s32.totalorder %v628, 0
    %vm650 = vcmp.ne.s32.totalorder %v629, 0
    %vm651 = vcmp.ne.s32.totalorder %v630, 0
    %vm652 = vcmp.ne.s32.totalorder %v631, 0
    %vm653 = vcmp.ne.s32.totalorder %v632, 0
    %vm654 = vcmp.ne.s32.totalorder %v633, 0
    %vm655 = vcmp.ne.s32.totalorder %v634, 0
    %vm656 = vcmp.ne.s32.totalorder %v635, 0
    %vm657 = vcmp.ne.s32.totalorder %v636, 0
    %vm658 = vcmp.ne.s32.totalorder %v637, 0
    %vm659 = vcmp.ne.s32.totalorder %v638, 0
    %vm660 = vcmp.ne.s32.totalorder %v639, 0
    %vm661 = vcmp.ne.s32.totalorder %v640, 0
    %vm662 = vcmp.ne.s32.totalorder %v641, 0
    %vm663 = vcmp.ne.s32.totalorder %v642, 0
    %vm664 = vcmp.ne.s32.totalorder %v643, 0
    %vm665 = vcmp.ne.s32.totalorder %v644, 0
    %vm666 = vcmp.ne.s32.totalorder %v645, 0
    %vm667 = vcmp.ne.s32.totalorder %v646, 0
    %vm668 = vcmp.ne.s32.totalorder %v647, 0
    %v669 = vsel %vm648, %v102, %v543
    %v670 = vsel %vm649, %v103, %v544
    %v671 = vsel %vm650, %v104, %v545
    %v672 = vsel %vm651, %v105, %v546
    %v673 = vsel %vm652, %v106, %v547
    %v674 = vsel %vm653, %v107, %v548
    %v675 = vsel %vm654, %v108, %v549
    %v676 = vsel %vm655, %v109, %v550
    %v677 = vsel %vm656, %v110, %v551
    %v678 = vsel %vm657, %v111, %v552
    %v679 = vsel %vm658, %v112, %v553
    %v680 = vsel %vm659, %v113, %v554
    %v681 = vsel %vm660, %v114, %v555
    %v682 = vsel %vm661, %v115, %v556
    %v683 = vsel %vm662, %v116, %v557
    %v684 = vsel %vm663, %v117, %v558
    %v685 = vsel %vm664, %v118, %v559
    %v686 = vsel %vm665, %v119, %v560
    %v687 = vsel %vm666, %v120, %v561
    %v688 = vsel %vm667, %v121, %v562
    %v689 = vsel %vm668, %v122, %v563
    %v690 = vmax.f32 %v81, 0.0
    %v691 = vmax.f32 %v82, 0.0
    %v692 = vmax.f32 %v83, 0.0
    %v693 = vmax.f32 %v84, 0.0
    %v694 = vmax.f32 %v85, 0.0
    %v695 = vmax.f32 %v86, 0.0
    %v696 = vmax.f32 %v87, 0.0
    %v697 = vmax.f32 %v88, 0.0
    %v698 = vmax.f32 %v89, 0.0
    %v699 = vmax.f32 %v90, 0.0
    %v700 = vmax.f32 %v91, 0.0
    %v701 = vmax.f32 %v92, 0.0
    %v702 = vmax.f32 %v93, 0.0
    %v703 = vmax.f32 %v94, 0.0
    %v704 = vmax.f32 %v95, 0.0
    %v705 = vmax.f32 %v96, 0.0
    %v706 = vmax.f32 %v97, 0.0
    %v707 = vmax.f32 %v98, 0.0
    %v708 = vmax.f32 %v99, 0.0
    %v709 = vmax.f32 %v100, 0.0
    %v710 = vmax.f32 %v101, 0.0
    %v711 = vmul.f32 %v81, %v102
    %v712 = vmul.f32 %v82, %v103
    %v713 = vmul.f32 %v83, %v104
    %v714 = vmul.f32 %v84, %v105
    %v715 = vmul.f32 %v85, %v106
    %v716 = vmul.f32 %v86, %v107
    %v717 = vmul.f32 %v87, %v108
    %v718 = vmul.f32 %v88, %v109
    %v719 = vmul.f32 %v89, %v110
    %v720 = vmul.f32 %v90, %v111
    %v721 = vmul.f32 %v91, %v112
    %v722 = vmul.f32 %v92, %v113
    %v723 = vmul.f32 %v93, %v114
    %v724 = vmul.f32 %v94, %v115
    %v725 = vmul.f32 %v95, %v116
    %v726 = vmul.f32 %v96, %v117
    %v727 = vmul.f32 %v97, %v118
    %v728 = vmul.f32 %v98, %v119
    %v729 = vmul.f32 %v99, %v120
    %v730 = vmul.f32 %v100, %v121
    %v731 = vmul.f32 %v101, %v122
    %v732 = vsub.f32 %v690, %v711
    %v733 = vsub.f32 %v691, %v712
    %v734 = vsub.f32 %v692, %v713
    %v735 = vsub.f32 %v693, %v714
    %v736 = vsub.f32 %v694, %v715
    %v737 = vsub.f32 %v695, %v716
    %v738 = vsub.f32 %v696, %v717
    %v739 = vsub.f32 %v697, %v718
    %v740 = vsub.f32 %v698, %v719
    %v741 = vsub.f32 %v699, %v720
    %v742 = vsub.f32 %v700, %v721
    %v743 = vsub.f32 %v701, %v722
    %v744 = vsub.f32 %v702, %v723
    %v745 = vsub.f32 %v703, %v724
    %v746 = vsub.f32 %v704, %v725
    %v747 = vsub.f32 %v705, %v726
    %v748 = vsub.f32 %v706, %v727
    %v749 = vsub.f32 %v707, %v728
    %v750 = vsub.f32 %v708, %v729
    %v751 = vsub.f32 %v709, %v730
    %v752 = vsub.f32 %v710, %v731
    %v753 = vadd.f32 %v732, %v341
    %v754 = vadd.f32 %v733, %v350
    %v755 = vadd.f32 %v734, %v359
    %v756 = vadd.f32 %v735, %v368
    %v757 = vadd.f32 %v736, %v377
    %v758 = vadd.f32 %v737, %v386
    %v759 = vadd.f32 %v738, %v395
    %v760 = vadd.f32 %v739, %v404
    %v761 = vadd.f32 %v740, %v413
    %v762 = vadd.f32 %v741, %v422
    %v763 = vadd.f32 %v742, %v431
    %v764 = vadd.f32 %v743, %v440
    %v765 = vadd.f32 %v744, %v449
    %v766 = vadd.f32 %v745, %v458
    %v767 = vadd.f32 %v746, %v467
    %v768 = vadd.f32 %v747, %v476
    %v769 = vadd.f32 %v748, %v485
    %v770 = vadd.f32 %v749, %v494
    %v771 = vadd.f32 %v750, %v503
    %v772 = vadd.f32 %v751, %v512
    %v773 = vadd.f32 %v752, %v521
    %v774 = vmul.f32 %v753, %v669
    %v775 = vmul.f32 %v754, %v670
    %v776 = vmul.f32 %v755, %v671
    %v777 = vmul.f32 %v756, %v672
    %v778 = vmul.f32 %v757, %v673
    %v779 = vmul.f32 %v758, %v674
    %v780 = vmul.f32 %v759, %v675
    %v781 = vmul.f32 %v760, %v676
    %v782 = vmul.f32 %v761, %v677
    %v783 = vmul.f32 %v762, %v678
    %v784 = vmul.f32 %v763, %v679
    %v785 = vmul.f32 %v764, %v680
    %v786 = vmul.f32 %v765, %v681
    %v787 = vmul.f32 %v766, %v682
    %v788 = vmul.f32 %v767, %v683
    %v789 = vmul.f32 %v768, %v684
    %v790 = vmul.f32 %v769, %v685
    %v791 = vmul.f32 %v770, %v686
    %v792 = vmul.f32 %v771, %v687
    %v793 = vmul.f32 %v772, %v688
    %v794 = vmul.f32 %v773, %v689
    %v795 = vld [vmem:[#allocation2] sm:$0xff]
    %v796 = vadd.f32 %v774, %v775
    %v797 = vadd.f32 %v796, %v776
    %v798 = vadd.f32 %v797, %v777
    %v799 = vadd.f32 %v798, %v778
    %v800 = vadd.f32 %v799, %v779
    %v801 = vadd.f32 %v800, %v780
    %v802 = vadd.f32 %v801, %v781
    %v803 = vadd.f32 %v802, %v782
    %v804 = vadd.f32 %v803, %v783
    %v805 = vadd.f32 %v804, %v784
    %v806 = vadd.f32 %v805, %v785
    %v807 = vadd.f32 %v806, %v786
    %v808 = vadd.f32 %v807, %v787
    %v809 = vadd.f32 %v808, %v788
    %v810 = vadd.f32 %v809, %v789
    %v811 = vadd.f32 %v810, %v790
    %v812 = vadd.f32 %v811, %v791
    %v813 = vadd.f32 %v812, %v792
    %v814 = vadd.f32 %v813, %v793
    %v815 = vadd.f32 %v814, %v794
    %v816 = vadd.f32 %v795, %v815
    %817 = vst [vmem:[#allocation2] sm:$0xff] %v816
    // Predicated region
    $region30: #{tpu_custom_call.1} parent=1 // pred_check
      %p818 = pneg %p76
    $region31: #{tpu_custom_call.1} parent=1 // pred_check_branch
      %820 = sbr.rel (%p818) target = $region33
    $region32: #{tpu_custom_call.1} parent=1 // pred_region
      %v821 = vld [vmem:[#allocation2] sm:$0xff]
      %v822 = vrot.slane %v821, 4
      %v823 = vadd.f32 %v821, %v822
      %v824 = vrot.slane %v823, 2
      %v825 = vadd.f32 %v823, %v824
      %v826 = vrot.slane %v825, 1
      %v827 = vadd.f32 %v825, %v826
      %828 = vst [vmem:[#allocation9] sm:$0x1] %v827
    $region33: #{tpu_custom_call.1} parent=1 // pred_fallthru
      _
    // Predicated region
    $region34: #{tpu_custom_call.1} parent=1 // pred_check
      _
    $region35: #{tpu_custom_call.1} parent=1 // pred_check_branch
      %830 = sbr.rel (0) target = $region37
    $region36: #{tpu_custom_call.1} parent=1 // pred_region
      %s832 = ssub.s32 16, 16
      %833 = vsyncadd [#allocation5], %s832
      %s835 = sshll.u32 [#allocation9], 4
      %s836 = int_to_ptr.vmem [resolvable:$true] %s835
      %838 = dma.vmem_to_hbm [thread:$0]  %s836, 16, %s3, [#allocation5]
    $region37: #{tpu_custom_call.1} parent=1 // pred_fallthru
      _
    // Predicated region
    $region38: #{tpu_custom_call.1} parent=1 // pred_check
      _
    $region39: #{tpu_custom_call.1} parent=1 // pred_check_branch
      %840 = sbr.rel (0) target = $region41
    $region40: #{tpu_custom_call.1} parent=1 // pred_region
      %841 = dma.done [#allocation5], 16
    $region41: #{tpu_custom_call.1} parent=1 // pred_fallthru
      _
    %842 = vsyncpa [#allocation4], 1
    %843 = vsyncpa [#allocation7], 1
    %844 = vsyncpa [#allocation5], 1

</llo_original>
